<compile_context>
chip_gen: v7x
topology: tpu7x:2x2x1
jax: 0.10.0
libtpu: 0.0.40
codegen_flags: <defaults>
</compile_context>

<pallas_src>
import functools

import jax
import jax.numpy as jnp
from jax.experimental import pallas as pl
from jax.experimental.pallas import tpu as pltpu


def _round_up(x, m):
    return ((x + m - 1) // m) * m


def _visual_extractor_kernel(x_ref, w_ref, b_ref, patch_ref, avg_ref, *,
                             p_true, p_pad, imgs_per_tile, inv_p):
    # x_ref:     (tile_m, K)                bf16 im2col rows for `imgs_per_tile` images (zero padded)
    # w_ref:     (K, tile_n)                bf16 backbone conv weight expressed as a matmul
    # b_ref:     (1, tile_n)                f32
    # patch_ref: (tile_m, tile_n)           f32 per-position features ((HW, C) layout == permute(0,2,1))
    # avg_ref:   (1, imgs_per_tile, tile_n) f32 global-avg-pooled features (one row per image)
    h = jnp.dot(x_ref[...], w_ref[...], preferred_element_type=jnp.float32)  # MXU: bf16 in, f32 acc
    h = jnp.maximum(h + b_ref[...], 0.0)                                     # bias + ReLU in f32
    patch_ref[...] = h.astype(patch_ref.dtype)

    # AvgPool2d(kernel=7, stride=1, pad=0) on a 7x7 map == mean over the P true spatial positions.
    # Padded rows (p >= p_true) hold relu(bias) garbage, so mask them out and divide by the true P.
    tile_n = h.shape[1]
    h3 = h.reshape(imgs_per_tile, p_pad, tile_n)
    row = jax.lax.broadcasted_iota(jnp.int32, h3.shape, 1)
    h3 = jnp.where(row < p_true, h3, 0.0)
    avg_ref[0] = (jnp.sum(h3, axis=1) * inv_p).astype(avg_ref.dtype)


def visual_extractor(images, weight, bias, *, kh=2, kw=2):
    """images: (B, Cin, H, W) NCHW f32. Returns (patch_feats (B, HW, C), avg_feats (B, C))."""
    B, Cin, H, W = images.shape
    Ho, Wo = H // kh, W // kw
    P = Ho * Wo
    K = Cin * kh * kw
    C = weight.shape[1]

    # glue: im2col of non-overlapping kh x kw patches (stride == kernel), NCHW -> (B, P, K)
    x = images.reshape(B, Cin, Ho, kh, Wo, kw).transpose(0, 2, 4, 1, 3, 5).reshape(B, P, K)

    # --- alignment / tiling --------------------------------------------------------------------
    P_pad = _round_up(P, 16)                 # sublane-aligned rows per image (16 = bf16 tile rows)
    C_pad = _round_up(C, 128)                # lane-dense feature channels
    imgs_per_tile = max(1, 128 // P_pad)     # pack whole images into a ~128-row MXU tile
    tile_m = imgs_per_tile * P_pad
    B_pad = _round_up(B, imgs_per_tile)
    M_pad = B_pad * P_pad
    tile_n = next(t for t in (512, 256, 128) if C_pad % t == 0)
    grid = (M_pad // tile_m, C_pad // tile_n)

    # --- padded / bf16 operands ----------------------------------------------------------------
    x_p = jnp.zeros((B_pad, P_pad, K), jnp.bfloat16).at[:B, :P, :].set(x.astype(jnp.bfloat16))
    x2d = x_p.reshape(M_pad, K)
    w_p = jnp.zeros((K, C_pad), jnp.bfloat16).at[:, :C].set(weight.astype(jnp.bfloat16))
    b_p = jnp.zeros((1, C_pad), jnp.float32).at[0, :C].set(bias.astype(jnp.float32))

    kernel = functools.partial(
        _visual_extractor_kernel,
        p_true=P, p_pad=P_pad, imgs_per_tile=imgs_per_tile, inv_p=float(1.0 / P))

    cost = pl.CostEstimate(
        flops=2 * M_pad * K * C_pad,
        transcendentals=0,
        bytes_accessed=(x2d.size * 2 + w_p.size * 2 + b_p.size * 4
                        + M_pad * C_pad * 4 + B_pad * C_pad * 4),
    )

    patch2d, avg3 = pl.pallas_call(
        kernel,
        out_shape=(
            jax.ShapeDtypeStruct((M_pad, C_pad), jnp.float32),
            jax.ShapeDtypeStruct((grid[0], imgs_per_tile, C_pad), jnp.float32),
        ),
        grid_spec=pltpu.PrefetchScalarGridSpec(
            num_scalar_prefetch=0,
            grid=grid,
            in_specs=[
                pl.BlockSpec((tile_m, K), lambda i, j: (i, 0)),
                pl.BlockSpec((K, tile_n), lambda i, j: (0, j)),
                pl.BlockSpec((1, tile_n), lambda i, j: (0, j)),
            ],
            out_specs=[
                pl.BlockSpec((tile_m, tile_n), lambda i, j: (i, j)),
                pl.BlockSpec((1, imgs_per_tile, tile_n), lambda i, j: (i, 0, j)),
            ],
        ),
        compiler_params=pltpu.CompilerParams(
            dimension_semantics=("parallel", "parallel")),
        cost_estimate=cost,
    )(x2d, w_p, b_p)

    # matches: patch_feats.reshape(B, C, -1).permute(0, 2, 1)  and  avgpool.squeeze().reshape(-1, C)
    patch_feats = patch2d.reshape(B_pad, P_pad, C_pad)[:B, :P, :C]
    avg_feats = avg3.reshape(B_pad, C_pad)[:B, :C]
    return patch_feats, avg_feats


if __name__ == "__main__":
    # Small synthetic shapes: backbone stand-in maps (B, Cin, 14, 14) -> (B, C, 7, 7) features,
    # so the AvgPool2d(7, 1, 0) semantics (global mean over the 7x7 map) are reproduced exactly.
    B, Cin, H, W = 2, 4, 14, 14
    kh = kw = 2
    K = Cin * kh * kw          # 16
    C = 32                     # feature channels (stand-in for resnet101's 2048)

    key = jax.random.PRNGKey(0)
    k_img, k_w, k_b = jax.random.split(key, 3)
    images = jax.random.normal(k_img, (B, Cin, H, W), dtype=jnp.float32)
    weight = jax.random.normal(k_w, (K, C), dtype=jnp.float32) * 0.1
    bias = jax.random.normal(k_b, (C,), dtype=jnp.float32) * 0.1

    patch_feats, avg_feats = jax.jit(visual_extractor)(images, weight, bias)
    jax.block_until_ready((patch_feats, avg_feats))

    # Pure-JAX reference for the same stand-in backbone + VisualExtractor forward.
    # Uses the same bf16 operands / f32 accumulation as the kernel's MXU path.
    Ho, Wo = H // kh, W // kw
    P = Ho * Wo
    x_cols = images.reshape(B, Cin, Ho, kh, Wo, kw).transpose(0, 2, 4, 1, 3, 5).reshape(B, P, K)
    h_ref = jax.lax.dot_general(
        x_cols.astype(jnp.bfloat16), weight.astype(jnp.bfloat16),
        (((2,), (0,)), ((), ())), preferred_element_type=jnp.float32)
    h_ref = jnp.maximum(h_ref + bias[None, None, :], 0.0)    # (B, HW, C)
    patch_expected = h_ref                                   # == permute(0, 2, 1) layout
    avg_expected = h_ref.mean(axis=1)                        # (B, C)

    assert patch_feats.shape == (B, P, C)
    assert avg_feats.shape == (B, C)
    assert jnp.allclose(patch_feats, patch_expected, atol=1e-4, rtol=1e-4)
    assert jnp.allclose(avg_feats, avg_expected, atol=1e-4, rtol=1e-4)

    print("KERNEL_OK")
</pallas_src>

<mosaic_0001>
module attributes {stable_mosaic.version = 11 : i64} {
  func.func @_visual_extractor_kernel(%arg0: i32, %arg1: i32, %arg2: memref<128x16xbf16, #tpu.memory_space<vmem>>, %arg3: memref<16x128xbf16, #tpu.memory_space<vmem>>, %arg4: memref<1x128xf32, #tpu.memory_space<vmem>>, %arg5: memref<128x128xf32, #tpu.memory_space<vmem>>, %arg6: memref<1x2x128xf32, #tpu.memory_space<vmem>>) attributes {dimension_semantics = [#tpu.dimension_semantics<parallel>, #tpu.dimension_semantics<parallel>], iteration_bounds = array<i64: 1, 1>, scalar_prefetch = 0 : i64, scratch_operands = 0 : i64, tpu.core_type = #tpu.core_type<tc>, window_params = [{transform_indices = @transform_0, window_bounds = array<i64: 128, 16>}, {transform_indices = @transform_1, window_bounds = array<i64: 16, 128>}, {transform_indices = @transform_2, window_bounds = array<i64: 1, 128>}, {transform_indices = @transform_3, window_bounds = array<i64: 128, 128>}, {transform_indices = @transform_4, window_bounds = array<i64: 1, 2, 128>}]} {
    %c0 = arith.constant 0 : index
    %c0_0 = arith.constant 0 : index
    %0 = vector.load %arg2[%c0, %c0_0] : memref<128x16xbf16, #tpu.memory_space<vmem>>, vector<128x16xbf16>
    %c0_1 = arith.constant 0 : index
    %c0_2 = arith.constant 0 : index
    %1 = vector.load %arg3[%c0_1, %c0_2] : memref<16x128xbf16, #tpu.memory_space<vmem>>, vector<16x128xbf16>
    %cst = arith.constant dense<0.000000e+00> : vector<128x128xf32>
    %2 = tpu.matmul %0, %1, %cst {dimension_numbers = #tpu.dot_dimension_numbers<[1], [0], [0], [1], [0, 0, 1, 1], [], []>} : vector<128x16xbf16>, vector<16x128xbf16>, vector<128x128xf32> -> vector<128x128xf32>
    %c0_3 = arith.constant 0 : index
    %c0_4 = arith.constant 0 : index
    %3 = vector.load %arg4[%c0_3, %c0_4] : memref<1x128xf32, #tpu.memory_space<vmem>>, vector<1x128xf32>
    %4 = vector.broadcast %3 : vector<1x128xf32> to vector<128x128xf32>
    %5 = arith.addf %2, %4 : vector<128x128xf32>
    %cst_5 = arith.constant 0.000000e+00 : f32
    %6 = vector.broadcast %cst_5 : f32 to vector<128x128xf32>
    %7 = arith.maximumf %5, %6 : vector<128x128xf32>
    %c0_6 = arith.constant 0 : index
    %c0_7 = arith.constant 0 : index
    %8 = vector.load %arg5[%c0_6, %c0_7] : memref<128x128xf32, #tpu.memory_space<vmem>>, vector<128x128xf32>
    tpu.vector_store %arg5[%c0_6, %c0_7], %7 {strides = array<i32>} : memref<128x128xf32, #tpu.memory_space<vmem>>, vector<128x128xf32>,
    %9 = vector.shape_cast %7 : vector<128x128xf32> to vector<2x64x128xf32>
    %10 = tpu.iota {dimensions = array<i32: 1>} : vector<2x64x128xi32>
    %c49_i32 = arith.constant 49 : i32
    %11 = vector.broadcast %c49_i32 : i32 to vector<2x64x128xi32>
    %12 = arith.cmpi slt, %10, %11 : vector<2x64x128xi32>
    %cst_8 = arith.constant 0.000000e+00 : f32
    %13 = vector.broadcast %cst_8 : f32 to vector<2x64x128xf32>
    %14 = arith.select %12, %9, %13 : vector<2x64x128xi1>, vector<2x64x128xf32>
    %cst_9 = arith.constant dense<0.000000e+00> : vector<2x128xf32>
    %15 = vector.multi_reduction <add>, %14, %cst_9 [1] : vector<2x64x128xf32> to vector<2x128xf32>
    %cst_10 = arith.constant 0.0204081628 : f32
    %16 = vector.broadcast %cst_10 : f32 to vector<2x128xf32>
    %17 = arith.mulf %15, %16 : vector<2x128xf32>
    %c0_11 = arith.constant 0 : index
    %c0_12 = arith.constant 0 : index
    %c0_13 = arith.constant 0 : index
    %18 = vector.load %arg6[%c0_11, %c0_12, %c0_13] : memref<1x2x128xf32, #tpu.memory_space<vmem>>, vector<1x2x128xf32>
    %19 = vector.shape_cast %18 : vector<1x2x128xf32> to vector<2x128xf32>
    %20 = vector.shape_cast %17 : vector<2x128xf32> to vector<1x2x128xf32>
    tpu.vector_store %arg6[%c0_11, %c0_12, %c0_13], %20 {strides = array<i32>} : memref<1x2x128xf32, #tpu.memory_space<vmem>>, vector<1x2x128xf32>,
    return
  }
  func.func @transform_0(%arg0: i32, %arg1: i32) -> (i32, i32) {
    %c0_i32 = arith.constant 0 : i32
    %c0_i32_0 = arith.constant 0 : i32
    return %arg0, %c0_i32 : i32, i32
  }
  func.func @transform_1(%arg0: i32, %arg1: i32) -> (i32, i32) {
    %c0_i32 = arith.constant 0 : i32
    %c0_i32_0 = arith.constant 0 : i32
    return %c0_i32, %arg1 : i32, i32
  }
  func.func @transform_2(%arg0: i32, %arg1: i32) -> (i32, i32) {
    %c0_i32 = arith.constant 0 : i32
    %c0_i32_0 = arith.constant 0 : i32
    return %c0_i32, %arg1 : i32, i32
  }
  func.func @transform_3(%arg0: i32, %arg1: i32) -> (i32, i32) {
    %c0_i32 = arith.constant 0 : i32
    return %arg0, %arg1 : i32, i32
  }
  func.func @transform_4(%arg0: i32, %arg1: i32) -> (i32, i32, i32) {
    %c0_i32 = arith.constant 0 : i32
    %c0_i32_0 = arith.constant 0 : i32
    return %arg0, %c0_i32, %arg1 : i32, i32, i32
  }
}

</mosaic_0001>

<llo_original>
// kernel: visual_extractor.1
$region0: #{visual_extractor.1}
  #allocation0 [shape = 'u32[]', space=smem, size = 0x4, offset = 0x4, fixed_abs, tag = 'smem constant byte address 0x4 - core index']
  #allocation1 [shape = 'u32[144,128]{1,0:T(1,128)}', space=vmem, size = 0x12000, scoped, tag = 'internal scratch']
  %s0 = inlined_call_operand.vmem [shape: bf16[128,16], index: 0, kind: input, shape index: {}]
  %s1 = inlined_call_operand.vmem [shape: bf16[16,128], index: 1, kind: input, shape index: {}]
  %s2 = inlined_call_operand.vmem [shape: f32[1,128], index: 2, kind: input, shape index: {}]
  %s3 = inlined_call_operand.vmem [shape: f32[128,128], index: 3, kind: output, shape index: {0}]
  %s4 = inlined_call_operand.hbm [shape: f32[1,2,128], index: 4, kind: output, shape index: {1}]
  %5 = xla_tuple %s3, %s4
  %s6 = sld [smem:[#allocation0]]
  $region30: #{visual_extractor.1} parent=0
    _
  %s8 = ssub.s32 1, %s6
  %s9 = scalar_select 0, %s8, %s6
  $region1: #{visual_extractor.1} parent=0
    #allocation2 [shape = 'u8[1024]{0}', space=vmem, size = 0x400, scoped, tag = 'output window, operand 1, single buffered']
    #allocation3 [shape = 's32[1]{0}', space=sflag, size = 0x4, scoped, tag = 'scoped memory for visual_extractor.1']
    %10 = vsyncpa [#allocation3], 0
    // Predicated region
    $region2: #{visual_extractor.1} parent=1 // pred_check
      _
    $region3: #{visual_extractor.1} parent=1 // pred_check_branch
      %12 = sbr.rel (0) target = $region5
    $region4: #{visual_extractor.1} parent=1 // pred_region
      _
    $region5: #{visual_extractor.1} parent=1 // pred_fallthru
      _
    // Predicated region
    $region6: #{visual_extractor.1} parent=1 // pred_check
      _
    $region7: #{visual_extractor.1} parent=1 // pred_check_branch
      %14 = sbr.rel (0) target = $region9
    $region8: #{visual_extractor.1} parent=1 // pred_region
      _
    $region9: #{visual_extractor.1} parent=1 // pred_fallthru
      _
    // Predicated region
    $region10: #{visual_extractor.1} parent=1 // pred_check
      _
    $region11: #{visual_extractor.1} parent=1 // pred_check_branch
      %16 = sbr.rel (0) target = $region13
    $region12: #{visual_extractor.1} parent=1 // pred_region
      _
    $region13: #{visual_extractor.1} parent=1 // pred_fallthru
      _
    %v18 = vld [vmem:[%s0] sm:$0xf]
    %v19 = vld [vmem:[%s0 + $0x4] sm:$0xf]
    %v20 = vld [vmem:[%s0 + $0x8] sm:$0xf]
    %v21 = vld [vmem:[%s0 + $0xc] sm:$0xf]
    %v22 = vld [vmem:[%s0 + $0x10] sm:$0xf]
    %v23 = vld [vmem:[%s0 + $0x14] sm:$0xf]
    %v24 = vld [vmem:[%s0 + $0x18] sm:$0xf]
    %v25 = vld [vmem:[%s0 + $0x1c] sm:$0xf]
    %v26 = vld [vmem:[%s0 + $0x20] sm:$0xf]
    %v27 = vld [vmem:[%s0 + $0x24] sm:$0xf]
    %v28 = vld [vmem:[%s0 + $0x28] sm:$0xf]
    %v29 = vld [vmem:[%s0 + $0x2c] sm:$0xf]
    %v30 = vld [vmem:[%s0 + $0x30] sm:$0xf]
    %v31 = vld [vmem:[%s0 + $0x34] sm:$0xf]
    %v32 = vld [vmem:[%s0 + $0x38] sm:$0xf]
    %v33 = vld [vmem:[%s0 + $0x3c] sm:$0xf]
    %v34 = vld [vmem:[%s1] sm:$0xf]
    %v35 = vld [vmem:[%s1 + $0x4] sm:$0xf]
    %v36 = vld [vmem:[%s2] sm:$0x1]
    %v38 = vlaneseq
    %v39 = vshrl.u32 %v38, 7
    %v40 = vsub.s32 0, %v39
    %v41 = vrot.slane %v36, %v40
    %v59 = vunpack.c.l.b16 %v18
    %v60 = vunpack.c.l.b16 %v19
    %v61 = vunpack.c.l.b16 %v20
    %v62 = vunpack.c.l.b16 %v21
    %v63 = vunpack.c.l.b16 %v22
    %v64 = vunpack.c.l.b16 %v23
    %v65 = vunpack.c.l.b16 %v24
    %v66 = vunpack.c.l.b16 %v25
    %v67 = vunpack.c.l.b16 %v26
    %v68 = vunpack.c.l.b16 %v27
    %v69 = vunpack.c.l.b16 %v28
    %v70 = vunpack.c.l.b16 %v29
    %v71 = vunpack.c.l.b16 %v30
    %v72 = vunpack.c.l.b16 %v31
    %v73 = vunpack.c.l.b16 %v32
    %v74 = vunpack.c.l.b16 %v33
    %v75 = vpack.c.b16 %v60, %v59
    %v76 = vpack.c.b16 %v62, %v61
    %v77 = vpack.c.b16 %v64, %v63
    %v78 = vpack.c.b16 %v66, %v65
    %v79 = vpack.c.b16 %v68, %v67
    %v80 = vpack.c.b16 %v70, %v69
    %v81 = vpack.c.b16 %v72, %v71
    %v82 = vpack.c.b16 %v74, %v73
    %v85 = vunpack.c.l.b16 %v34
    %v86 = vunpack.c.l.b16 %v35
    %v87 = vpack.c.b16 %v86, %v85
    %vm89 = vcmask 130048
    %v91 = vsel %vm89, %v75, 0
    %v94 = vsel %vm89, %v76, 0
    %v97 = vsel %vm89, %v77, 0
    %v100 = vsel %vm89, %v78, 0
    %v103 = vsel %vm89, %v79, 0
    %v106 = vsel %vm89, %v80, 0
    %v109 = vsel %vm89, %v81, 0
    %v112 = vsel %vm89, %v82, 0
    %114 = vmatprep.subr.bf16.mxu0 0
    %115 = vmatpush1.bf16.msra.mxu0 %v87
    %116 = vmatprep.subr.bf16.mxu0 0
    %117 = vmatpush1.bf16.msra.mxu0 0
    %118 = vmatprep.subr.bf16.mxu0 0
    %119 = vmatpush1.bf16.msra.mxu0 0
    %120 = vmatprep.subr.bf16.mxu0 0
    %121 = vmatpush1.bf16.msra.mxu0 0
    %122 = vmatprep.subr.bf16.mxu0 0
    %123 = vmatpush1.bf16.msra.mxu0 0
    %124 = vmatprep.subr.bf16.mxu0 0
    %125 = vmatpush1.bf16.msra.mxu0 0
    %126 = vmatprep.subr.bf16.mxu0 0
    %127 = vmatpush1.bf16.msra.mxu0 0
    %128 = vmatprep.subr.bf16.mxu0 0
    %129 = vmatpush1.bf16.msra.mxu0 0
    %130 = vmatprep.subr.bf16.mxu0 0
    %131 = vmatpush1.bf16.msra.mxu0 0
    %132 = vmatprep.subr.bf16.mxu0 0
    %133 = vmatpush1.bf16.msra.mxu0 0
    %134 = vmatprep.subr.bf16.mxu0 0
    %135 = vmatpush1.bf16.msra.mxu0 0
    %136 = vmatprep.subr.bf16.mxu0 0
    %137 = vmatpush1.bf16.msra.mxu0 0
    %138 = vmatprep.subr.bf16.mxu0 0
    %139 = vmatpush1.bf16.msra.mxu0 0
    %140 = vmatprep.subr.bf16.mxu0 0
    %141 = vmatpush1.bf16.msra.mxu0 0
    %142 = vmatprep.subr.bf16.mxu0 0
    %143 = vmatpush1.bf16.msra.mxu0 0
    %144 = vmatprep.subr.bf16.mxu0 0
    %145 = vmatpush1.bf16.msra.mxu0 0
    %146 = vmatprep.mubr.bf16.mxu0 0
    %147 = vmatmul.mubr.bf16.gmra.mrb[0].mxu0 %v91
    %v148 = vpop.f32.mrb[0].mxu0
    %v149 = vadd.f32 %v41, %v148
    %v150 = vpop.f32.mrb[0].mxu0
    %v151 = vpop.f32.mrb[0].mxu0
    %v152 = vadd.f32 %v41, %v151
    %v153 = vpop.f32.mrb[0].mxu0
    %154 = vmatprep.mubr.bf16.mxu0 0
    %155 = vmatmul.mubr.bf16.gmra.mrb[0].mxu0 %v94
    %v156 = vpop.f32.mrb[0].mxu0
    %v157 = vadd.f32 %v41, %v156
    %v158 = vpop.f32.mrb[0].mxu0
    %v159 = vpop.f32.mrb[0].mxu0
    %v160 = vadd.f32 %v41, %v159
    %v161 = vpop.f32.mrb[0].mxu0
    %162 = vmatprep.mubr.bf16.mxu0 0
    %163 = vmatmul.mubr.bf16.gmra.mrb[0].mxu0 %v97
    %v164 = vpop.f32.mrb[0].mxu0
    %v165 = vadd.f32 %v41, %v164
    %v166 = vpop.f32.mrb[0].mxu0
    %v167 = vpop.f32.mrb[0].mxu0
    %v168 = vadd.f32 %v41, %v167
    %v169 = vpop.f32.mrb[0].mxu0
    %170 = vmatprep.mubr.bf16.mxu0 0
    %171 = vmatmul.mubr.bf16.gmra.mrb[0].mxu0 %v100
    %v172 = vpop.f32.mrb[0].mxu0
    %v173 = vadd.f32 %v41, %v172
    %v174 = vpop.f32.mrb[0].mxu0
    %v175 = vpop.f32.mrb[0].mxu0
    %v176 = vadd.f32 %v41, %v175
    %v177 = vpop.f32.mrb[0].mxu0
    %178 = vmatprep.mubr.bf16.mxu0 0
    %179 = vmatmul.mubr.bf16.gmra.mrb[0].mxu0 %v103
    %v180 = vpop.f32.mrb[0].mxu0
    %v181 = vadd.f32 %v41, %v180
    %v182 = vpop.f32.mrb[0].mxu0
    %v183 = vpop.f32.mrb[0].mxu0
    %v184 = vadd.f32 %v41, %v183
    %v185 = vpop.f32.mrb[0].mxu0
    %186 = vmatprep.mubr.bf16.mxu0 0
    %187 = vmatmul.mubr.bf16.gmra.mrb[0].mxu0 %v106
    %v188 = vpop.f32.mrb[0].mxu0
    %v189 = vadd.f32 %v41, %v188
    %v190 = vpop.f32.mrb[0].mxu0
    %v191 = vpop.f32.mrb[0].mxu0
    %v192 = vadd.f32 %v41, %v191
    %v193 = vpop.f32.mrb[0].mxu0
    %194 = vmatprep.mubr.bf16.mxu0 0
    %195 = vmatmul.mubr.bf16.gmra.mrb[0].mxu0 %v109
    %v196 = vpop.f32.mrb[0].mxu0
    %v197 = vadd.f32 %v41, %v196
    %v198 = vpop.f32.mrb[0].mxu0
    %v199 = vpop.f32.mrb[0].mxu0
    %v200 = vadd.f32 %v41, %v199
    %v201 = vpop.f32.mrb[0].mxu0
    %202 = vmatprep.mubr.bf16.mxu0 0
    %203 = vmatmul.mubr.bf16.gmra.mrb[0].mxu0 %v112
    %v204 = vpop.f32.mrb[0].mxu0
    %v205 = vadd.f32 %v41, %v204
    %v206 = vpop.f32.mrb[0].mxu0
    %v207 = vpop.f32.mrb[0].mxu0
    %v208 = vadd.f32 %v41, %v207
    %v209 = vpop.f32.mrb[0].mxu0
    %210 = vdwg.mxu0
    %v211 = vmax.f32 %v149, 0.0
    %v212 = vmax.f32 %v152, 0.0
    %v213 = vmax.f32 %v157, 0.0
    %v214 = vmax.f32 %v160, 0.0
    %v215 = vmax.f32 %v165, 0.0
    %v216 = vmax.f32 %v168, 0.0
    %v217 = vmax.f32 %v173, 0.0
    %v218 = vmax.f32 %v176, 0.0
    %v219 = vmax.f32 %v181, 0.0
    %v220 = vmax.f32 %v184, 0.0
    %v221 = vmax.f32 %v189, 0.0
    %v222 = vmax.f32 %v192, 0.0
    %v223 = vmax.f32 %v197, 0.0
    %v224 = vmax.f32 %v200, 0.0
    %v225 = vmax.f32 %v205, 0.0
    %v226 = vmax.f32 %v208, 0.0
    %227 = vst [vmem:[%s3] sm:$0xff] %v211
    %228 = vst [vmem:[%s3 + $0x8] sm:$0xff] %v212
    %229 = vst [vmem:[%s3 + $0x10] sm:$0xff] %v213
    %230 = vst [vmem:[%s3 + $0x18] sm:$0xff] %v214
    %231 = vst [vmem:[%s3 + $0x20] sm:$0xff] %v215
    %232 = vst [vmem:[%s3 + $0x28] sm:$0xff] %v216
    %233 = vst [vmem:[%s3 + $0x30] sm:$0xff] %v217
    %234 = vst [vmem:[%s3 + $0x38] sm:$0xff] %v218
    %235 = vst [vmem:[%s3 + $0x40] sm:$0xff] %v219
    %236 = vst [vmem:[%s3 + $0x48] sm:$0xff] %v220
    %237 = vst [vmem:[%s3 + $0x50] sm:$0xff] %v221
    %238 = vst [vmem:[%s3 + $0x58] sm:$0xff] %v222
    %239 = vst [vmem:[%s3 + $0x60] sm:$0xff] %v223
    %240 = vst [vmem:[%s3 + $0x68] sm:$0xff] %v224
    %241 = vst [vmem:[%s3 + $0x70] sm:$0xff] %v225
    %242 = vst [vmem:[%s3 + $0x78] sm:$0xff] %v226
    %v243 = vlaneseq
    %v244 = vshrl.u32 %v243, 7
    %v245 = vadd.s32 %v244, 8
    %v246 = vadd.s32 %v244, 16
    %v247 = vadd.s32 %v244, 24
    %v248 = vadd.s32 %v244, 32
    %v249 = vadd.s32 %v244, 40
    %v250 = vadd.s32 %v244, 48
    %v251 = vadd.s32 %v244, 56
    %vm252 = vcmp.lt.s32.totalorder %v244, 49
    %vm253 = vcmp.lt.s32.totalorder %v245, 49
    %vm254 = vcmp.lt.s32.totalorder %v246, 49
    %vm255 = vcmp.lt.s32.totalorder %v247, 49
    %vm256 = vcmp.lt.s32.totalorder %v248, 49
    %vm257 = vcmp.lt.s32.totalorder %v249, 49
    %vm258 = vcmp.lt.s32.totalorder %v250, 49
    %vm259 = vcmp.lt.s32.totalorder %v251, 49
    %v260 = vsel %vm252, %v211, 0.0
    %v261 = vsel %vm253, %v212, 0.0
    %v262 = vsel %vm254, %v213, 0.0
    %v263 = vsel %vm255, %v214, 0.0
    %v264 = vsel %vm256, %v215, 0.0
    %v265 = vsel %vm257, %v216, 0.0
    %v266 = vsel %vm258, %v217, 0.0
    %v267 = vsel %vm259, %v218, 0.0
    %v268 = vsel %vm252, %v219, 0.0
    %v269 = vsel %vm253, %v220, 0.0
    %v270 = vsel %vm254, %v221, 0.0
    %v271 = vsel %vm255, %v222, 0.0
    %v272 = vsel %vm256, %v223, 0.0
    %v273 = vsel %vm257, %v224, 0.0
    %v274 = vsel %vm258, %v225, 0.0
    %v275 = vsel %vm259, %v226, 0.0
    %v276 = vadd.f32 %v260, %v261
    %v277 = vadd.f32 %v276, %v262
    %v278 = vadd.f32 %v277, %v263
    %v279 = vadd.f32 %v278, %v264
    %v280 = vadd.f32 %v279, %v265
    %v281 = vadd.f32 %v280, %v266
    %v282 = vadd.f32 %v281, %v267
    %v283 = vrot.slane %v282, 4
    %v284 = vadd.f32 %v282, %v283
    %v285 = vrot.slane %v284, 2
    %v286 = vadd.f32 %v284, %v285
    %v287 = vrot.slane %v286, 1
    %v288 = vadd.f32 %v286, %v287
    %v289 = vadd.f32 %v268, %v269
    %v290 = vadd.f32 %v289, %v270
    %v291 = vadd.f32 %v290, %v271
    %v292 = vadd.f32 %v291, %v272
    %v293 = vadd.f32 %v292, %v273
    %v294 = vadd.f32 %v293, %v274
    %v295 = vadd.f32 %v294, %v275
    %v296 = vrot.slane %v295, 4
    %v297 = vadd.f32 %v295, %v296
    %v298 = vrot.slane %v297, 2
    %v299 = vadd.f32 %v297, %v298
    %v300 = vrot.slane %v299, 1
    %v301 = vadd.f32 %v299, %v300
    %v302 = vmul.f32 %v288, 0.020408163
    %v303 = vmul.f32 %v301, 0.020408163
    %vm306 = vcmask 1041409
    %v307 = vsel %vm306, %v303, %v302
    %309 = vst [vmem:[#allocation2] sm:$0x3] %v307
    // Predicated region
    $region14: #{visual_extractor.1} parent=1 // pred_check
      _
    $region15: #{visual_extractor.1} parent=1 // pred_check_branch
      %311 = sbr.rel (0) target = $region17
    $region16: #{visual_extractor.1} parent=1 // pred_region
      _
    $region17: #{visual_extractor.1} parent=1 // pred_fallthru
      _
    // Predicated region
    $region18: #{visual_extractor.1} parent=1 // pred_check
      _
    $region19: #{visual_extractor.1} parent=1 // pred_check_branch
      %313 = sbr.rel (0) target = $region21
    $region20: #{visual_extractor.1} parent=1 // pred_region
      %s315 = ssub.s32 32, 32
      %316 = vsyncadd [#allocation3], %s315
      %s318 = sshll.u32 [#allocation2], 4
      %s319 = int_to_ptr.vmem [resolvable:$true] %s318
      %321 = dma.vmem_to_hbm [thread:$0]  %s319, 32, %s4, [#allocation3]
    $region21: #{visual_extractor.1} parent=1 // pred_fallthru
      _
    // Predicated region
    $region22: #{visual_extractor.1} parent=1 // pred_check
      _
    $region23: #{visual_extractor.1} parent=1 // pred_check_branch
      %323 = sbr.rel (0) target = $region25
    $region24: #{visual_extractor.1} parent=1 // pred_region
      _
    $region25: #{visual_extractor.1} parent=1 // pred_fallthru
      _
    // Predicated region
    $region26: #{visual_extractor.1} parent=1 // pred_check
      _
    $region27: #{visual_extractor.1} parent=1 // pred_check_branch
      %325 = sbr.rel (0) target = $region29
    $region28: #{visual_extractor.1} parent=1 // pred_region
      %326 = dma.done [#allocation3], 32
    $region29: #{visual_extractor.1} parent=1 // pred_fallthru
      _
    %327 = vsyncpa [#allocation3], 1

</llo_original>
